<compile_context>
chip_gen: v7x
topology: tpu7x:2x2x1
jax: 0.10.0
libtpu: 0.0.40
codegen_flags: <defaults>
</compile_context>

<pallas_src>
import jax
import jax.numpy as jnp
from jax.experimental import pallas as pl
from jax.experimental.pallas import tpu as pltpu


# Dtype of the adjacency operand fed to the MXU. bf16 is exact for the 0/1
# adjacency; note the *scaled feature* operand is also rounded to this dtype
# before the N^2 matmul, so set this to jnp.float32 if bit-closeness to the
# f32 PyTorch reference is required (costs 2x HBM bytes on A).
ADJ_MATMUL_DTYPE = jnp.bfloat16


# ----------------------------------------------------------------------------
# Fused Pallas kernel (transposed, lane-dense layout):
#   gcn_conv(16->32) + ReLU + [Dropout skipped] + gcn_conv(32->8)
# Per grid step (one graph):
#   a_ref : (N, N)       adjacency, ADJ_MATMUL_DTYPE, symmetric, zero diagonal
#   xT_ref: (F_in, N)    features, transposed
#   w1t   : (F_hid, F_in)   b1: (F_hid, 1)
#   w2t   : (F_out, F_hid)  b2: (F_out, 1)
#   oT_ref: (F_out, N)   output, transposed
# ----------------------------------------------------------------------------
def _gcn_stack_kernel(a_ref, xT_ref, w1t_ref, b1_ref, w2t_ref, b2_ref, oT_ref):
    a = a_ref[...]                                  # (N, N), ADJ_MATMUL_DTYPE
    xT = xT_ref[...].astype(jnp.float32)            # (F_in, N)

    # --- shared normalization (computed once, reused by both layers) -------
    # deg = rowsum(A + I) = colsum(A) + 1 (A symmetric), accumulated in f32.
    # Kept as a (1, N) row so all scalings are lane-aligned broadcasts.
    deg = jnp.sum(a, axis=0, keepdims=True, dtype=jnp.float32) + 1.0   # (1, N)
    inv_sqrt_d = jax.lax.rsqrt(deg)                                     # (1, N)
    inv_d = inv_sqrt_d * inv_sqrt_d                                     # (1, N)

    def propagate_T(hT):
        """Returns [D^-1/2 (A + I) D^-1/2 @ h]^T for hT of shape (F, N)
        without materializing A+I or a normalized NxN matrix:
            D^-1/2 (A+I) D^-1/2 h == D^-1/2 (A (D^-1/2 h)) + D^-1 h
        and, by symmetry of A,  (A @ s)^T == s^T @ A."""
        sT = (hT * inv_sqrt_d).astype(a.dtype)                     # (F, N)
        aggT = jnp.dot(sT, a, preferred_element_type=jnp.float32)  # (F, N)
        return aggT * inv_sqrt_d + hT * inv_d

    # --- layer 1: F_in(16) < F_hid(32) -> aggregate first, then W1 ---------
    hT = propagate_T(xT)                                                   # (F_in, N)
    hT = jnp.dot(w1t_ref[...], hT, preferred_element_type=jnp.float32)     # (F_hid, N)
    hT = jnp.maximum(hT + b1_ref[...], 0.0)                                # ReLU
    # Dropout(p=0.5): skipped — inference path (training == False).

    # --- layer 2: F_hid(32) > F_out(8) -> W2 first, then aggregate ---------
    tT = jnp.dot(w2t_ref[...], hT, preferred_element_type=jnp.float32)     # (F_out, N)
    outT = propagate_T(tT) + b2_ref[...]                                   # (F_out, N)

    oT_ref[...] = outT.astype(oT_ref.dtype)


# ----------------------------------------------------------------------------
# Wrapper: single pallas_call over a batch of graphs
# ----------------------------------------------------------------------------
def gcn_stack(adj, x, w1, b1, w2, b2):
    """adj:(B,N,N) or (N,N)   x:(B,N,F_in) or (N,F_in)
       w1:(F_in,F_hid) b1:(F_hid,)   w2:(F_hid,F_out) b2:(F_out,)
       returns (B,N,F_out) (or (N,F_out) for unbatched inputs)."""
    squeeze = adj.ndim == 2
    if squeeze:
        adj = adj[None]
        x = x[None]

    B, n, _ = adj.shape
    f_in = x.shape[-1]
    f_hid = w1.shape[1]
    f_out = w2.shape[1]

    # NOTE: the deg = rowsum(A)+1 decomposition assumes a symmetric adjacency
    # with a zero diagonal (no pre-existing self loops), matching PyG gcn_norm.
    adj_k = adj.astype(ADJ_MATMUL_DTYPE)           # 0/1 -> exact in bf16
    xT = jnp.swapaxes(x, -1, -2)                   # (B, F_in, N) lane-dense
    w1t = w1.T                                     # (F_hid, F_in)
    w2t = w2.T                                     # (F_out, F_hid)
    b1c = b1.reshape(f_hid, 1)
    b2c = b2.reshape(f_out, 1)

    outT = pl.pallas_call(
        _gcn_stack_kernel,
        out_shape=jax.ShapeDtypeStruct((B, f_out, n), x.dtype),
        grid=(B,),
        in_specs=[
            pl.BlockSpec((None, n, n), lambda b: (b, 0, 0)),       # adj (per graph)
            pl.BlockSpec((None, f_in, n), lambda b: (b, 0, 0)),    # x^T (per graph)
            pl.BlockSpec((f_hid, f_in), lambda b: (0, 0)),         # W1^T (shared)
            pl.BlockSpec((f_hid, 1), lambda b: (0, 0)),            # b1   (shared)
            pl.BlockSpec((f_out, f_hid), lambda b: (0, 0)),        # W2^T (shared)
            pl.BlockSpec((f_out, 1), lambda b: (0, 0)),            # b2   (shared)
        ],
        out_specs=pl.BlockSpec((None, f_out, n), lambda b: (b, 0, 0)),
        compiler_params=pltpu.CompilerParams(
            # Batch axis is embarrassingly parallel: both v7x TensorCores get
            # half the graphs; no effect on single-TC v5e/v6e.
            dimension_semantics=("parallel",),
        ),
    )(adj_k, xT, w1t, b1c, w2t, b2c)

    out = jnp.swapaxes(outT, -1, -2)               # (B, N, F_out)
    return out[0] if squeeze else out


# ----------------------------------------------------------------------------
# Model: mirrors GCNConvQueryEmbeddingModel.init_model()/forward()
# ----------------------------------------------------------------------------
def init_model(key, in_dim=16, hidden_dim=32, out_dim=8):
    """Deterministic parameter init (Glorot-uniform weights, zero bias,
    matching PyG GCNConv defaults)."""
    k1, k2 = jax.random.split(key, 2)

    def glorot(k, fan_in, fan_out):
        lim = jnp.sqrt(6.0 / (fan_in + fan_out))
        return jax.random.uniform(k, (fan_in, fan_out), jnp.float32, -lim, lim)

    layers = [
        ("gcn_conv", (glorot(k1, in_dim, hidden_dim),
                      jnp.zeros((hidden_dim,), jnp.float32))),
        ("ReLU", None),
        ("Dropout", 0.5),
        ("gcn_conv", (glorot(k2, hidden_dim, out_dim),
                      jnp.zeros((out_dim,), jnp.float32))),
    ]
    return layers


def forward(layers, features, graph, *, training=False):
    """Same semantics as the PyTorch forward() on the inference path; the
    canonical [gcn_conv, ReLU, Dropout, gcn_conv] config is executed as one
    fused, batched Pallas kernel (Dropout is skipped when training == False,
    exactly as in the reference forward())."""
    if training:
        # TODO(synk): Dropout with training=True (stochastic masking) not
        # implemented; this replica covers the inference path only.
        raise NotImplementedError("training=True (Dropout) path not implemented")

    layer_types = [t for t, _ in layers]
    assert layer_types == ["gcn_conv", "ReLU", "Dropout", "gcn_conv"], (
        "fused kernel covers the gcn->ReLU->Dropout->gcn config")

    (w1, b1) = layers[0][1]
    (w2, b2) = layers[3][1]
    return gcn_stack(graph, features, w1, b1, w2, b2)


# ----------------------------------------------------------------------------
if __name__ == "__main__":
    key = jax.random.PRNGKey(0)
    k_adj, k_feat, k_params = jax.random.split(key, 3)

    B, N, F_IN, F_HID, F_OUT = 4, 64, 16, 32, 8

    # Batch of symmetric binary adjacencies, zero diagonal.
    rnd = (jax.random.uniform(k_adj, (B, N, N)) < 0.1).astype(jnp.float32)
    upper = jnp.triu(rnd, k=1)
    adj = upper + jnp.swapaxes(upper, -1, -2)

    features = jax.random.normal(k_feat, (B, N, F_IN), dtype=jnp.float32)

    layers = init_model(k_params, F_IN, F_HID, F_OUT)

    out = forward(layers, features, adj, training=False)
    out = jax.block_until_ready(out)

    assert out.shape == (B, N, F_OUT) and out.dtype == jnp.float32
    assert bool(jnp.all(jnp.isfinite(out)))

    # Unbatched path still works (same semantics as the PyTorch module).
    out1 = jax.block_until_ready(forward(layers, features[0], adj[0], training=False))
    assert out1.shape == (N, F_OUT)
    assert bool(jnp.allclose(out1, out[0], rtol=1e-3, atol=1e-3))

    print("KERNEL_OK")
</pallas_src>

<mosaic_0001>
module attributes {stable_mosaic.version = 11 : i64} {
  func.func @_gcn_stack_kernel(%arg0: i32, %arg1: memref<1x64x64xbf16, #tpu.memory_space<vmem>>, %arg2: memref<1x16x64xf32, #tpu.memory_space<vmem>>, %arg3: memref<32x16xf32, #tpu.memory_space<vmem>>, %arg4: memref<32x1xf32, #tpu.memory_space<vmem>>, %arg5: memref<8x32xf32, #tpu.memory_space<vmem>>, %arg6: memref<8x1xf32, #tpu.memory_space<vmem>>, %arg7: memref<1x8x64xf32, #tpu.memory_space<vmem>>) attributes {dimension_semantics = [#tpu.dimension_semantics<parallel>], iteration_bounds = array<i64: 4>, scalar_prefetch = 0 : i64, scratch_operands = 0 : i64, tpu.core_type = #tpu.core_type<tc>, window_params = [{transform_indices = @transform_0, window_bounds = array<i64: 1, 64, 64>}, {transform_indices = @transform_1, window_bounds = array<i64: 1, 16, 64>}, {pipeline_mode = #tpu.pipeline_mode<synchronous>, transform_indices = @transform_2, window_bounds = array<i64: 32, 16>}, {pipeline_mode = #tpu.pipeline_mode<synchronous>, transform_indices = @transform_3, window_bounds = array<i64: 32, 1>}, {pipeline_mode = #tpu.pipeline_mode<synchronous>, transform_indices = @transform_4, window_bounds = array<i64: 8, 32>}, {pipeline_mode = #tpu.pipeline_mode<synchronous>, transform_indices = @transform_5, window_bounds = array<i64: 8, 1>}, {transform_indices = @transform_6, window_bounds = array<i64: 1, 8, 64>}]} {
    %c0 = arith.constant 0 : index
    %c0_0 = arith.constant 0 : index
    %c0_1 = arith.constant 0 : index
    %0 = vector.load %arg1[%c0, %c0_0, %c0_1] : memref<1x64x64xbf16, #tpu.memory_space<vmem>>, vector<1x64x64xbf16>
    %1 = vector.shape_cast %0 : vector<1x64x64xbf16> to vector<64x64xbf16>
    %c0_2 = arith.constant 0 : index
    %c0_3 = arith.constant 0 : index
    %c0_4 = arith.constant 0 : index
    %2 = vector.load %arg2[%c0_2, %c0_3, %c0_4] : memref<1x16x64xf32, #tpu.memory_space<vmem>>, vector<1x16x64xf32>
    %3 = vector.shape_cast %2 : vector<1x16x64xf32> to vector<16x64xf32>
    %4 = arith.extf %1 : vector<64x64xbf16> to vector<64x64xf32>
    %cst = arith.constant dense<0.000000e+00> : vector<64xf32>
    %5 = vector.multi_reduction <add>, %4, %cst [0] : vector<64x64xf32> to vector<64xf32>
    %6 = vector.shape_cast %5 : vector<64xf32> to vector<1x64xf32>
    %cst_5 = arith.constant 1.000000e+00 : f32
    %7 = vector.broadcast %cst_5 : f32 to vector<1x64xf32>
    %8 = arith.addf %6, %7 : vector<1x64xf32>
    %9 = math.rsqrt %8 : vector<1x64xf32>
    %10 = arith.mulf %9, %9 : vector<1x64xf32>
    %11 = vector.broadcast %9 : vector<1x64xf32> to vector<16x64xf32>
    %12 = arith.mulf %3, %11 : vector<16x64xf32>
    %13 = arith.truncf %12 : vector<16x64xf32> to vector<16x64xbf16>
    %cst_6 = arith.constant dense<0.000000e+00> : vector<16x64xf32>
    %14 = tpu.matmul %13, %1, %cst_6 {dimension_numbers = #tpu.dot_dimension_numbers<[1], [0], [0], [1], [0, 0, 1, 1], [], []>} : vector<16x64xbf16>, vector<64x64xbf16>, vector<16x64xf32> -> vector<16x64xf32>
    %15 = vector.broadcast %9 : vector<1x64xf32> to vector<16x64xf32>
    %16 = arith.mulf %14, %15 : vector<16x64xf32>
    %17 = vector.broadcast %10 : vector<1x64xf32> to vector<16x64xf32>
    %18 = arith.mulf %3, %17 : vector<16x64xf32>
    %19 = arith.addf %16, %18 : vector<16x64xf32>
    %c0_7 = arith.constant 0 : index
    %c0_8 = arith.constant 0 : index
    %20 = vector.load %arg3[%c0_7, %c0_8] : memref<32x16xf32, #tpu.memory_space<vmem>>, vector<32x16xf32>
    %cst_9 = arith.constant dense<0.000000e+00> : vector<32x64xf32>
    %21 = tpu.matmul %20, %19, %cst_9 {dimension_numbers = #tpu.dot_dimension_numbers<[1], [0], [0], [1], [0, 0, 1, 1], [], []>} : vector<32x16xf32>, vector<16x64xf32>, vector<32x64xf32> -> vector<32x64xf32>
    %c0_10 = arith.constant 0 : index
    %c0_11 = arith.constant 0 : index
    %22 = vector.load %arg4[%c0_10, %c0_11] : memref<32x1xf32, #tpu.memory_space<vmem>>, vector<32x1xf32>
    %23 = vector.broadcast %22 : vector<32x1xf32> to vector<32x64xf32>
    %24 = arith.addf %21, %23 : vector<32x64xf32>
    %cst_12 = arith.constant 0.000000e+00 : f32
    %25 = vector.broadcast %cst_12 : f32 to vector<32x64xf32>
    %26 = arith.maximumf %24, %25 : vector<32x64xf32>
    %c0_13 = arith.constant 0 : index
    %c0_14 = arith.constant 0 : index
    %27 = vector.load %arg5[%c0_13, %c0_14] : memref<8x32xf32, #tpu.memory_space<vmem>>, vector<8x32xf32>
    %cst_15 = arith.constant dense<0.000000e+00> : vector<8x64xf32>
    %28 = tpu.matmul %27, %26, %cst_15 {dimension_numbers = #tpu.dot_dimension_numbers<[1], [0], [0], [1], [0, 0, 1, 1], [], []>} : vector<8x32xf32>, vector<32x64xf32>, vector<8x64xf32> -> vector<8x64xf32>
    %29 = vector.broadcast %9 : vector<1x64xf32> to vector<8x64xf32>
    %30 = arith.mulf %28, %29 : vector<8x64xf32>
    %31 = arith.truncf %30 : vector<8x64xf32> to vector<8x64xbf16>
    %cst_16 = arith.constant dense<0.000000e+00> : vector<8x64xf32>
    %32 = tpu.matmul %31, %1, %cst_16 {dimension_numbers = #tpu.dot_dimension_numbers<[1], [0], [0], [1], [0, 0, 1, 1], [], []>} : vector<8x64xbf16>, vector<64x64xbf16>, vector<8x64xf32> -> vector<8x64xf32>
    %33 = vector.broadcast %9 : vector<1x64xf32> to vector<8x64xf32>
    %34 = arith.mulf %32, %33 : vector<8x64xf32>
    %35 = vector.broadcast %10 : vector<1x64xf32> to vector<8x64xf32>
    %36 = arith.mulf %28, %35 : vector<8x64xf32>
    %37 = arith.addf %34, %36 : vector<8x64xf32>
    %c0_17 = arith.constant 0 : index
    %c0_18 = arith.constant 0 : index
    %38 = vector.load %arg6[%c0_17, %c0_18] : memref<8x1xf32, #tpu.memory_space<vmem>>, vector<8x1xf32>
    %39 = vector.broadcast %38 : vector<8x1xf32> to vector<8x64xf32>
    %40 = arith.addf %37, %39 : vector<8x64xf32>
    %c0_19 = arith.constant 0 : index
    %c0_20 = arith.constant 0 : index
    %c0_21 = arith.constant 0 : index
    %41 = vector.load %arg7[%c0_19, %c0_20, %c0_21] : memref<1x8x64xf32, #tpu.memory_space<vmem>>, vector<1x8x64xf32>
    %42 = vector.shape_cast %41 : vector<1x8x64xf32> to vector<8x64xf32>
    %43 = vector.shape_cast %40 : vector<8x64xf32> to vector<1x8x64xf32>
    tpu.vector_store %arg7[%c0_19, %c0_20, %c0_21], %43 {strides = array<i32>} : memref<1x8x64xf32, #tpu.memory_space<vmem>>, vector<1x8x64xf32>,
    return
  }
  func.func @transform_0(%arg0: i32) -> (i32, i32, i32) {
    %c0_i32 = arith.constant 0 : i32
    %c0_i32_0 = arith.constant 0 : i32
    %c0_i32_1 = arith.constant 0 : i32
    return %arg0, %c0_i32, %c0_i32_0 : i32, i32, i32
  }
  func.func @transform_1(%arg0: i32) -> (i32, i32, i32) {
    %c0_i32 = arith.constant 0 : i32
    %c0_i32_0 = arith.constant 0 : i32
    %c0_i32_1 = arith.constant 0 : i32
    return %arg0, %c0_i32, %c0_i32_0 : i32, i32, i32
  }
  func.func @transform_2(%arg0: i32) -> (i32, i32) {
    %c0_i32 = arith.constant 0 : i32
    %c0_i32_0 = arith.constant 0 : i32
    %c0_i32_1 = arith.constant 0 : i32
    return %c0_i32, %c0_i32_0 : i32, i32
  }
  func.func @transform_3(%arg0: i32) -> (i32, i32) {
    %c0_i32 = arith.constant 0 : i32
    %c0_i32_0 = arith.constant 0 : i32
    %c0_i32_1 = arith.constant 0 : i32
    return %c0_i32, %c0_i32_0 : i32, i32
  }
  func.func @transform_4(%arg0: i32) -> (i32, i32) {
    %c0_i32 = arith.constant 0 : i32
    %c0_i32_0 = arith.constant 0 : i32
    %c0_i32_1 = arith.constant 0 : i32
    return %c0_i32, %c0_i32_0 : i32, i32
  }
  func.func @transform_5(%arg0: i32) -> (i32, i32) {
    %c0_i32 = arith.constant 0 : i32
    %c0_i32_0 = arith.constant 0 : i32
    %c0_i32_1 = arith.constant 0 : i32
    return %c0_i32, %c0_i32_0 : i32, i32
  }
  func.func @transform_6(%arg0: i32) -> (i32, i32, i32) {
    %c0_i32 = arith.constant 0 : i32
    %c0_i32_0 = arith.constant 0 : i32
    %c0_i32_1 = arith.constant 0 : i32
    return %arg0, %c0_i32, %c0_i32_0 : i32, i32, i32
  }
}

</mosaic_0001>

<llo_original>
// kernel: tpu_custom_call.1
$region0: #{tpu_custom_call.1}
  #allocation0 [shape = 'u32[]', space=smem, size = 0x4, offset = 0x4, fixed_abs, tag = 'smem constant byte address 0x4 - core index']
  #allocation1 [shape = 'u32[144,128]{1,0:T(1,128)}', space=vmem, size = 0x12000, scoped, tag = 'internal scratch']
  %s0 = inlined_call_operand.hbm [shape: bf16[4,64,64], index: 0, kind: input, shape index: {}]
  %s1 = inlined_call_operand.vmem [shape: f32[4,16,64], index: 1, kind: input, shape index: {}]
  %s2 = inlined_call_operand.vmem [shape: f32[32,16], index: 2, kind: input, shape index: {}]
  %s3 = inlined_call_operand.vmem [shape: f32[32,1], index: 3, kind: input, shape index: {}]
  %s4 = inlined_call_operand.vmem [shape: f32[8,32], index: 4, kind: input, shape index: {}]
  %s5 = inlined_call_operand.vmem [shape: f32[8,1], index: 5, kind: input, shape index: {}]
  %s6 = inlined_call_operand.hbm [shape: f32[4,8,64], index: 6, kind: output, shape index: {}]
  %s7 = sld [smem:[#allocation0]]
  $region61: #{tpu_custom_call.1} parent=0
    _
  %s9 = ssub.s32 1, %s7
  %s10 = scalar_select 0, %s9, %s7
  $region1: #{tpu_custom_call.1} parent=0
    #allocation2 [shape = 'u8[32768]{0}', space=vmem, size = 0x8000, scoped, tag = 'input window, operand 0']
    #allocation3 [shape = 's32[2]{0}', space=sflag, size = 0x8, scoped, tag = 'scoped memory for tpu_custom_call.1']
    #allocation4 [shape = 's32[2]{0}', space=sflag, size = 0x8, scoped, tag = 'scoped memory for tpu_custom_call.1']
    #allocation5 [shape = 'u8[8192]{0}', space=vmem, size = 0x2000, scoped, tag = 'output window, operand 0']
    %11 = vsyncpa [#allocation3], 0
    %s12 = scalar_lea.sflag [#allocation3], 1
    %13 = vsyncpa %s12, 0
    %14 = vsyncpa [#allocation4], 0
    %s15 = scalar_lea.sflag [#allocation4], 1
    %16 = vsyncpa %s15, 0
    loop: start=0, step=1, limit=6
    $region2: #{tpu_custom_call.1} parent=1 // loop_pre_header
      _
    $region3: #{tpu_custom_call.1} parent=1 // loop_header
      %s18 = sphi 0, %s22
      %p19 = scmp.ge.s32.totalorder %s18, 6
      %s28 = sphi 0, %s30
      %s31 = sphi 0, %s28
      %s32 = sphi 0, %s31
      %s48 = sphi 0, %s32
      %s54 = sphi 0, %s56
      %s57 = sphi 0, %s54
      %s58 = sphi 0, %s57
      %s74 = sphi 0, %s58
      %s78 = sphi 0, %s78
      %s80 = sphi 0, %s78
      %s81 = sphi 0, %s80
      %s95 = sphi 0, %s81
      %s99 = sphi 0, %s99
      %s101 = sphi 0, %s99
      %s102 = sphi 0, %s101
      %s116 = sphi 0, %s102
      %s120 = sphi 0, %s120
      %s122 = sphi 0, %s120
      %s123 = sphi 0, %s122
      %s137 = sphi 0, %s123
      %s141 = sphi 0, %s141
      %s143 = sphi 0, %s141
      %s144 = sphi 0, %s143
      %s158 = sphi 0, %s144
      %s164 = sphi 0, %s166
      %s167 = sphi 0, %s164
      %s168 = sphi 0, %s167
      %s184 = sphi 0, %s168
    $region4: #{tpu_custom_call.1} parent=1 // loop_header_branch
      %21 = sbr.rel (%p19) target = $region8
    $region5: #{tpu_custom_call.1} parent=1 // loop_body
      %s23 = ssub.s32 %s18, 1
      %s24 = ssub.s32 %s18, 2
      %s25 = sadd.s32 %s18, 1
      %s26 = ssub.s32 %s18, %s25
      %p27 = scmp.eq.s32.totalorder %s26, 0
      %s29 = sadd.s32 %s28, 1
      %s30 = scalar_select %p27, %s28, %s29
      %p33 = pneg %p27
      %p34 = scmp.eq.s32.totalorder %s18, 3
      %p35 = por %p33, %p34
      %p36 = scmp.ne.s32.totalorder %s28, %s31
      %p37 = scmp.eq.s32.totalorder %s18, 0
      %p38 = por %p36, %p37
      %p39 = scmp.ne.s32.totalorder %s28, %s31
      %p40 = scmp.eq.s32.totalorder %s23, 3
      %p41 = por %p39, %p40
      %p42 = scmp.ne.s32.totalorder %s31, %s32
      %p43 = scmp.eq.s32.totalorder %s23, 0
      %p44 = por %p42, %p43
      %p45 = scmp.ne.s32.totalorder %s31, %s32
      %p46 = scmp.eq.s32.totalorder %s24, 3
      %p47 = por %p45, %p46
      %p49 = scmp.ne.s32.totalorder %s32, %s48
      %p50 = scmp.eq.s32.totalorder %s24, 0
      %p51 = por %p49, %p50
      %s52 = ssub.s32 %s18, %s25
      %p53 = scmp.eq.s32.totalorder %s52, 0
      %s55 = sadd.s32 %s54, 1
      %s56 = scalar_select %p53, %s54, %s55
      %p59 = pneg %p53
      %p60 = scmp.eq.s32.totalorder %s18, 3
      %p61 = por %p59, %p60
      %p62 = scmp.ne.s32.totalorder %s54, %s57
      %p63 = scmp.eq.s32.totalorder %s18, 0
      %p64 = por %p62, %p63
      %p65 = scmp.ne.s32.totalorder %s54, %s57
      %p66 = scmp.eq.s32.totalorder %s23, 3
      %p67 = por %p65, %p66
      %p68 = scmp.ne.s32.totalorder %s57, %s58
      %p69 = scmp.eq.s32.totalorder %s23, 0
      %p70 = por %p68, %p69
      %p71 = scmp.ne.s32.totalorder %s57, %s58
      %p72 = scmp.eq.s32.totalorder %s24, 3
      %p73 = por %p71, %p72
      %p75 = scmp.ne.s32.totalorder %s58, %s74
      %p76 = scmp.eq.s32.totalorder %s24, 0
      %p77 = por %p75, %p76
      %s79 = sadd.s32 %s78, 1
      %p82 = scmp.eq.s32.totalorder %s18, 3
      %p83 = scmp.ne.s32.totalorder %s78, %s80
      %p84 = scmp.eq.s32.totalorder %s18, 0
      %p85 = por %p83, %p84
      %p86 = scmp.ne.s32.totalorder %s78, %s80
      %p87 = scmp.eq.s32.totalorder %s23, 3
      %p88 = por %p86, %p87
      %p89 = scmp.ne.s32.totalorder %s80, %s81
      %p90 = scmp.eq.s32.totalorder %s23, 0
      %p91 = por %p89, %p90
      %p92 = scmp.ne.s32.totalorder %s80, %s81
      %p93 = scmp.eq.s32.totalorder %s24, 3
      %p94 = por %p92, %p93
      %p96 = scmp.ne.s32.totalorder %s81, %s95
      %p97 = scmp.eq.s32.totalorder %s24, 0
      %p98 = por %p96, %p97
      %s100 = sadd.s32 %s99, 1
      %p103 = scmp.eq.s32.totalorder %s18, 3
      %p104 = scmp.ne.s32.totalorder %s99, %s101
      %p105 = scmp.eq.s32.totalorder %s18, 0
      %p106 = por %p104, %p105
      %p107 = scmp.ne.s32.totalorder %s99, %s101
      %p108 = scmp.eq.s32.totalorder %s23, 3
      %p109 = por %p107, %p108
      %p110 = scmp.ne.s32.totalorder %s101, %s102
      %p111 = scmp.eq.s32.totalorder %s23, 0
      %p112 = por %p110, %p111
      %p113 = scmp.ne.s32.totalorder %s101, %s102
      %p114 = scmp.eq.s32.totalorder %s24, 3
      %p115 = por %p113, %p114
      %p117 = scmp.ne.s32.totalorder %s102, %s116
      %p118 = scmp.eq.s32.totalorder %s24, 0
      %p119 = por %p117, %p118
      %s121 = sadd.s32 %s120, 1
      %p124 = scmp.eq.s32.totalorder %s18, 3
      %p125 = scmp.ne.s32.totalorder %s120, %s122
      %p126 = scmp.eq.s32.totalorder %s18, 0
      %p127 = por %p125, %p126
      %p128 = scmp.ne.s32.totalorder %s120, %s122
      %p129 = scmp.eq.s32.totalorder %s23, 3
      %p130 = por %p128, %p129
      %p131 = scmp.ne.s32.totalorder %s122, %s123
      %p132 = scmp.eq.s32.totalorder %s23, 0
      %p133 = por %p131, %p132
      %p134 = scmp.ne.s32.totalorder %s122, %s123
      %p135 = scmp.eq.s32.totalorder %s24, 3
      %p136 = por %p134, %p135
      %p138 = scmp.ne.s32.totalorder %s123, %s137
      %p139 = scmp.eq.s32.totalorder %s24, 0
      %p140 = por %p138, %p139
      %s142 = sadd.s32 %s141, 1
      %p145 = scmp.eq.s32.totalorder %s18, 3
      %p146 = scmp.ne.s32.totalorder %s141, %s143
      %p147 = scmp.eq.s32.totalorder %s18, 0
      %p148 = por %p146, %p147
      %p149 = scmp.ne.s32.totalorder %s141, %s143
      %p150 = scmp.eq.s32.totalorder %s23, 3
      %p151 = por %p149, %p150
      %p152 = scmp.ne.s32.totalorder %s143, %s144
      %p153 = scmp.eq.s32.totalorder %s23, 0
      %p154 = por %p152, %p153
      %p155 = scmp.ne.s32.totalorder %s143, %s144
      %p156 = scmp.eq.s32.totalorder %s24, 3
      %p157 = por %p155, %p156
      %p159 = scmp.ne.s32.totalorder %s144, %s158
      %p160 = scmp.eq.s32.totalorder %s24, 0
      %p161 = por %p159, %p160
      %s162 = ssub.s32 %s18, %s25
      %p163 = scmp.eq.s32.totalorder %s162, 0
      %s165 = sadd.s32 %s164, 1
      %s166 = scalar_select %p163, %s164, %s165
      %p169 = pneg %p163
      %p170 = scmp.eq.s32.totalorder %s18, 3
      %p171 = por %p169, %p170
      %p172 = scmp.ne.s32.totalorder %s164, %s167
      %p173 = scmp.eq.s32.totalorder %s18, 0
      %p174 = por %p172, %p173
      %p175 = scmp.ne.s32.totalorder %s164, %s167
      %p176 = scmp.eq.s32.totalorder %s23, 3
      %p177 = por %p175, %p176
      %p178 = scmp.ne.s32.totalorder %s167, %s168
      %p179 = scmp.eq.s32.totalorder %s23, 0
      %p180 = por %p178, %p179
      %p181 = scmp.ne.s32.totalorder %s167, %s168
      %p182 = scmp.eq.s32.totalorder %s24, 3
      %p183 = por %p181, %p182
      %p185 = scmp.ne.s32.totalorder %s168, %s184
      %p186 = scmp.eq.s32.totalorder %s24, 0
      %p187 = por %p185, %p186
      %p188 = scmp.le.s32.totalorder 1, %s18
      %p189 = scmp.lt.s32.totalorder %s18, 5
      %p190 = pnand %p188, %p189
      %p191 = pneg %p190
      // Predicated region
      $region9: #{tpu_custom_call.1} parent=5 // pred_check
        _
      $region10: #{tpu_custom_call.1} parent=5 // pred_check_branch
        %193 = sbr.rel (%p190) target = $region12
      $region11: #{tpu_custom_call.1} parent=5 // pred_region
        %s194 = ssub.s32 %s18, 1
        // Predicated region
        $region13: #{tpu_custom_call.1} parent=11 // pred_check
          %p195 = pneg %p91
        $region14: #{tpu_custom_call.1} parent=11 // pred_check_branch
          %197 = sbr.rel (%p195) target = $region16
        $region15: #{tpu_custom_call.1} parent=11 // pred_region
          _
        $region16: #{tpu_custom_call.1} parent=11 // pred_fallthru
          _
        // Predicated region
        $region17: #{tpu_custom_call.1} parent=11 // pred_check
          %p198 = pneg %p112
        $region18: #{tpu_custom_call.1} parent=11 // pred_check_branch
          %200 = sbr.rel (%p198) target = $region20
        $region19: #{tpu_custom_call.1} parent=11 // pred_region
          _
        $region20: #{tpu_custom_call.1} parent=11 // pred_fallthru
          _
        // Predicated region
        $region21: #{tpu_custom_call.1} parent=11 // pred_check
          %p201 = pneg %p133
        $region22: #{tpu_custom_call.1} parent=11 // pred_check_branch
          %203 = sbr.rel (%p201) target = $region24
        $region23: #{tpu_custom_call.1} parent=11 // pred_region
          _
        $region24: #{tpu_custom_call.1} parent=11 // pred_fallthru
          _
        // Predicated region
        $region25: #{tpu_custom_call.1} parent=11 // pred_check
          %p204 = pneg %p154
        $region26: #{tpu_custom_call.1} parent=11 // pred_check_branch
          %206 = sbr.rel (%p204) target = $region28
        $region27: #{tpu_custom_call.1} parent=11 // pred_region
          _
        $region28: #{tpu_custom_call.1} parent=11 // pred_fallthru
          _
      $region12: #{tpu_custom_call.1} parent=5 // pred_fallthru
        _
      %p207 = scmp.lt.s32.totalorder %s18, 4
      // Predicated region
      $region29: #{tpu_custom_call.1} parent=5 // pred_check
        %p208 = pneg %p207
      $region30: #{tpu_custom_call.1} parent=5 // pred_check_branch
        %210 = sbr.rel (%p208) target = $region32
      $region31: #{tpu_custom_call.1} parent=5 // pred_region
        // Predicated region
        $region33: #{tpu_custom_call.1} parent=31 // pred_check
          %p211 = pneg %p38
        $region34: #{tpu_custom_call.1} parent=31 // pred_check_branch
          %213 = sbr.rel (%p211) target = $region36
        $region35: #{tpu_custom_call.1} parent=31 // pred_region
          %s214 = sand.u32 %s28, 1
          %s215 = scalar_lea.sflag [#allocation3], %s214
          %s216 = sand.u32 %s28, 1
          %s217 = smul.addr %s216, 32
          %s218 = scalar_lea.vmem [#allocation2], %s217
          %s220 = ssub.s32 512, 512
          %221 = vsyncadd %s215, %s220
          %s222 = smul.addr %s18, 8
          %s223 = smul.addr %s222, 64
          %s224 = scalar_lea.hbm %s0, %s223
          %s225 = sshll.u32 %s218, 4
          %s226 = int_to_ptr.vmem [resolvable:$true] %s225
          %231 = dma.hbm_to_vmem [thread:$0]  %s224, 512, %s226, %s215, 64, 64, 4
        $region36: #{tpu_custom_call.1} parent=31 // pred_fallthru
          _
        // Predicated region
        $region37: #{tpu_custom_call.1} parent=31 // pred_check
          %p232 = pneg %p64
        $region38: #{tpu_custom_call.1} parent=31 // pred_check_branch
          %234 = sbr.rel (%p232) target = $region40
        $region39: #{tpu_custom_call.1} parent=31 // pred_region
          %p235 = scmp.lt.s32.totalorder %s18, 3
          %s236 = scalar_select %p235, %s18, 3
          %s237 = smul.addr %s236, 2
          %s238 = smul.addr %s237, 8
          %s239 = scalar_lea.vmem %s1, %s238
        $region40: #{tpu_custom_call.1} parent=31 // pred_fallthru
          _
      $region32: #{tpu_custom_call.1} parent=5 // pred_fallthru
        _
      %p240 = scmp.le.s32.totalorder 1, %s18
      %p241 = scmp.lt.s32.totalorder %s18, 5
      %p242 = pnand %p240, %p241
      %p243 = pneg %p242
      // Predicated region
      $region41: #{tpu_custom_call.1} parent=5 // pred_check
        _
      $region42: #{tpu_custom_call.1} parent=5 // pred_check_branch
        %245 = sbr.rel (%p242) target = $region44
      $region43: #{tpu_custom_call.1} parent=5 // pred_region
        %s246 = ssub.s32 %s18, 1
        %s247 = sand.u32 %s31, 1
        %s248 = scalar_lea.sflag [#allocation3], %s247
        %s249 = sand.u32 %s31, 1
        %s250 = smul.addr %s249, 32
        %s251 = scalar_lea.vmem [#allocation2], %s250
        // Predicated region
        $region45: #{tpu_custom_call.1} parent=43 // pred_check
          %p252 = pneg %p44
        $region46: #{tpu_custom_call.1} parent=43 // pred_check_branch
          %254 = sbr.rel (%p252) target = $region48
        $region47: #{tpu_custom_call.1} parent=43 // pred_region
          %255 = dma.done %s248, 512
        $region48: #{tpu_custom_call.1} parent=43 // pred_fallthru
          _
        %s256 = sand.u32 %s31, 1
        %s257 = scalar_lea.sflag [#allocation3], %s256
        %s258 = sand.u32 %s31, 1
        %s259 = smul.addr %s258, 32
        %s260 = scalar_lea.vmem [#allocation2], %s259
        %p261 = pneg %p44
        %p262 = pneg %p41
        %p263 = scmp.lt.s32.totalorder %s23, 3
        %s264 = scalar_select %p263, %s23, 3
        %s265 = smul.addr %s264, 2
        %s266 = smul.addr %s265, 8
        %s267 = scalar_lea.vmem %s1, %s266
        %p268 = pneg %p70
        %p269 = pneg %p67
        %p270 = pneg %p91
        %p271 = pneg %p88
        %p272 = pneg %p112
        %p273 = pneg %p109
        %p274 = pneg %p133
        %p275 = pneg %p130
        %p276 = pneg %p154
        %p277 = pneg %p151
        %p278 = pneg %p180
        %p279 = pneg %p177
        %s280 = sand.u32 %s167, 1
        %s281 = scalar_lea.sflag [#allocation4], %s280
        %s282 = sand.u32 %s167, 1
        %s283 = smul.addr %s282, 8
        %s284 = scalar_lea.vmem [#allocation5], %s283
        %p285 = scmp.lt.s32.totalorder %s23, 3
        %s286 = scalar_select %p285, %s23, 3
        %s287 = smul.addr %s286, 2
        %s288 = smul.addr %s287, 8
        %s289 = scalar_lea.vmem %s1, %s288
        %v291 = vld [vmem:[%s251] sm:$0xf]
        %v292 = vld [vmem:[%s251 + $0x4] sm:$0xf]
        %v293 = vld [vmem:[%s251 + $0x8] sm:$0xf]
        %v294 = vld [vmem:[%s251 + $0xc] sm:$0xf]
        %v295 = vld [vmem:[%s251 + $0x10] sm:$0xf]
        %v296 = vld [vmem:[%s251 + $0x14] sm:$0xf]
        %v297 = vld [vmem:[%s251 + $0x18] sm:$0xf]
        %v298 = vld [vmem:[%s251 + $0x1c] sm:$0xf]
        %v299 = vld [vmem:[%s289] sm:$0xff]
        %v300 = vld [vmem:[%s289 + $0x8] sm:$0xff]
        %v301 = vunpack.c.l.bf16 %v291
        %v302 = vunpack.c.l.bf16 %v292
        %v303 = vunpack.c.l.bf16 %v293
        %v304 = vunpack.c.l.bf16 %v294
        %v305 = vunpack.c.l.bf16 %v295
        %v306 = vunpack.c.l.bf16 %v296
        %v307 = vunpack.c.l.bf16 %v297
        %v308 = vunpack.c.l.bf16 %v298
        %vm309 = vcmask 523264
        %v310 = vsel %vm309, %v301, 0.0
        %v311 = vsel %vm309, %v302, 0.0
        %v312 = vadd.f32 %v310, %v311
        %v313 = vsel %vm309, %v303, 0.0
        %v314 = vadd.f32 %v312, %v313
        %v315 = vsel %vm309, %v304, 0.0
        %v316 = vadd.f32 %v314, %v315
        %v317 = vsel %vm309, %v305, 0.0
        %v318 = vadd.f32 %v316, %v317
        %v319 = vsel %vm309, %v306, 0.0
        %v320 = vadd.f32 %v318, %v319
        %v321 = vsel %vm309, %v307, 0.0
        %v322 = vadd.f32 %v320, %v321
        %v323 = vsel %vm309, %v308, 0.0
        %v324 = vadd.f32 %v322, %v323
        %v325 = vrot.slane %v324, 4
        %v326 = vadd.f32 %v324, %v325
        %v327 = vrot.slane %v326, 2
        %v328 = vadd.f32 %v326, %v327
        %v329 = vrot.slane %v328, 1
        %v330 = vadd.f32 %v328, %v329
        %v331 = vadd.f32 %v330, 1.0
        %v332 = vrsqrt.pop %v331
        %v333 = vmul.f32 %v332, %v332
        %v334 = vmul.f32 %v299, %v332
        %v335 = vmul.f32 %v300, %v332
        %v336 = vpack.c.bf16 %v335, %v334
        %v345 = vunpack.c.l.b16 %v291
        %v346 = vunpack.c.l.b16 %v292
        %v347 = vunpack.c.l.b16 %v293
        %v348 = vunpack.c.l.b16 %v294
        %v349 = vunpack.c.l.b16 %v295
        %v350 = vunpack.c.l.b16 %v296
        %v351 = vunpack.c.l.b16 %v297
        %v352 = vunpack.c.l.b16 %v298
        %v353 = vpack.c.b16 %v346, %v345
        %v354 = vpack.c.b16 %v348, %v347
        %v355 = vpack.c.b16 %v350, %v349
        %v356 = vpack.c.b16 %v352, %v351
        %v362 = vsel %vm309, %v336, 0
        %364 = vmatprep.subr.bf16.mxu0 0
        %365 = vmatpush1.bf16.msra.mxu0 %v353
        %366 = vmatprep.subr.bf16.mxu0 0
        %367 = vmatpush1.bf16.msra.mxu0 %v354
        %368 = vmatprep.subr.bf16.mxu0 0
        %369 = vmatpush1.bf16.msra.mxu0 %v355
        %370 = vmatprep.subr.bf16.mxu0 0
        %371 = vmatpush1.bf16.msra.mxu0 %v356
        %372 = vmatprep.subr.bf16.mxu0 0
        %373 = vmatpush1.bf16.msra.mxu0 0
        %374 = vmatprep.subr.bf16.mxu0 0
        %375 = vmatpush1.bf16.msra.mxu0 0
        %376 = vmatprep.subr.bf16.mxu0 0
        %377 = vmatpush1.bf16.msra.mxu0 0
        %378 = vmatprep.subr.bf16.mxu0 0
        %379 = vmatpush1.bf16.msra.mxu0 0
        %380 = vmatprep.subr.bf16.mxu0 0
        %381 = vmatpush1.bf16.msra.mxu0 0
        %382 = vmatprep.subr.bf16.mxu0 0
        %383 = vmatpush1.bf16.msra.mxu0 0
        %384 = vmatprep.subr.bf16.mxu0 0
        %385 = vmatpush1.bf16.msra.mxu0 0
        %386 = vmatprep.subr.bf16.mxu0 0
        %387 = vmatpush1.bf16.msra.mxu0 0
        %388 = vmatprep.subr.bf16.mxu0 0
        %389 = vmatpush1.bf16.msra.mxu0 0
        %390 = vmatprep.subr.bf16.mxu0 0
        %391 = vmatpush1.bf16.msra.mxu0 0
        %392 = vmatprep.subr.bf16.mxu0 0
        %393 = vmatpush1.bf16.msra.mxu0 0
        %394 = vmatprep.subr.bf16.mxu0 0
        %395 = vmatpush1.bf16.msra.mxu0 0
        %396 = vmatprep.mubr.bf16.mxu0 0
        %397 = vmatmul.mubr.bf16.gmra.mrb[0].mxu0 %v362
        %v398 = vpop.f32.mrb[0].mxu0
        %v399 = vadd.f32 0.0, %v398
        %v400 = vpop.f32.mrb[0].mxu0
        %v401 = vpop.f32.mrb[0].mxu0
        %v402 = vadd.f32 0.0, %v401
        %v403 = vpop.f32.mrb[0].mxu0
        %404 = vdwg.mxu0
        %v405 = vmul.f32 %v399, %v332
        %v406 = vmul.f32 %v402, %v332
        %v407 = vmul.f32 %v299, %v333
        %v408 = vmul.f32 %v300, %v333
        %v409 = vadd.f32 %v405, %v407
        %v410 = vadd.f32 %v406, %v408
        %v411 = vld [vmem:[%s2] sm:$0xff]
        %v412 = vld [vmem:[%s2 + $0x8] sm:$0xff]
        %v413 = vld [vmem:[%s2 + $0x10] sm:$0xff]
        %v414 = vld [vmem:[%s2 + $0x18] sm:$0xff]
        %v415 = vld [vmem:[%s3] sm:$0xff]
        %v416 = vld [vmem:[%s3 + $0x8] sm:$0xff]
        %v417 = vld [vmem:[%s3 + $0x10] sm:$0xff]
        %v418 = vld [vmem:[%s3 + $0x18] sm:$0xff]
        %420 = vset.pattern.permute.xlu0 0
        %421 = vperm.xlu0 %420, %v415
        %v422 = vpop.permute.xlu0 %421
        %425 = vset.pattern.permute.xlu0 0
        %426 = vperm.xlu0 %425, %v416
        %v427 = vpop.permute.xlu0 %426
        %430 = vset.pattern.permute.xlu0 0
        %431 = vperm.xlu0 %430, %v417
        %v432 = vpop.permute.xlu0 %431
        %435 = vset.pattern.permute.xlu0 0
        %436 = vperm.xlu0 %435, %v418
        %v437 = vpop.permute.xlu0 %436
        %vm439 = vcmask 130048
        %v441 = vsel %vm439, %v411, 0
        %v444 = vsel %vm439, %v412, 0
        %v447 = vsel %vm439, %v413, 0
        %v450 = vsel %vm439, %v414, 0
        %452 = vmatprep.subr.mxu0 0.0
        %453 = vmatpush1.msra.mxu0 %v409
        %454 = vmatprep.subr.mxu0 0.0
        %455 = vmatpush1.msra.mxu0 %v410
        %456 = vmatprep.subr.mxu0 0.0
        %457 = vmatpush1.msra.mxu0 0.0
        %458 = vmatprep.subr.mxu0 0.0
        %459 = vmatpush1.msra.mxu0 0.0
        %460 = vmatprep.subr.mxu0 0.0
        %461 = vmatpush1.msra.mxu0 0.0
        %462 = vmatprep.subr.mxu0 0.0
        %463 = vmatpush1.msra.mxu0 0.0
        %464 = vmatprep.subr.mxu0 0.0
        %465 = vmatpush1.msra.mxu0 0.0
        %466 = vmatprep.subr.mxu0 0.0
        %467 = vmatpush1.msra.mxu0 0.0
        %468 = vmatprep.subr.mxu0 0.0
        %469 = vmatpush1.msra.mxu0 0.0
        %470 = vmatprep.subr.mxu0 0.0
        %471 = vmatpush1.msra.mxu0 0.0
        %472 = vmatprep.subr.mxu0 0.0
        %473 = vmatpush1.msra.mxu0 0.0
        %474 = vmatprep.subr.mxu0 0.0
        %475 = vmatpush1.msra.mxu0 0.0
        %476 = vmatprep.subr.mxu0 0.0
        %477 = vmatpush1.msra.mxu0 0.0
        %478 = vmatprep.subr.mxu0 0.0
        %479 = vmatpush1.msra.mxu0 0.0
        %480 = vmatprep.subr.mxu0 0.0
        %481 = vmatpush1.msra.mxu0 0.0
        %482 = vmatprep.subr.mxu0 0.0
        %483 = vmatpush1.msra.mxu0 0.0
        %484 = vmatprep.subr.mxu0 0.0
        %485 = vmatpush1.msra.mxu0 0.0
        %486 = vmatprep.subr.mxu0 0.0
        %487 = vmatpush1.msra.mxu0 0.0
        %488 = vmatprep.subr.mxu0 0.0
        %489 = vmatpush1.msra.mxu0 0.0
        %490 = vmatprep.subr.mxu0 0.0
        %491 = vmatpush1.msra.mxu0 0.0
        %492 = vmatprep.subr.mxu0 0.0
        %493 = vmatpush1.msra.mxu0 0.0
        %494 = vmatprep.subr.mxu0 0.0
        %495 = vmatpush1.msra.mxu0 0.0
        %496 = vmatprep.subr.mxu0 0.0
        %497 = vmatpush1.msra.mxu0 0.0
        %498 = vmatprep.subr.mxu0 0.0
        %499 = vmatpush1.msra.mxu0 0.0
        %500 = vmatprep.subr.mxu0 0.0
        %501 = vmatpush1.msra.mxu0 0.0
        %502 = vmatprep.subr.mxu0 0.0
        %503 = vmatpush1.msra.mxu0 0.0
        %504 = vmatprep.subr.mxu0 0.0
        %505 = vmatpush1.msra.mxu0 0.0
        %506 = vmatprep.subr.mxu0 0.0
        %507 = vmatpush1.msra.mxu0 0.0
        %508 = vmatprep.subr.mxu0 0.0
        %509 = vmatpush1.msra.mxu0 0.0
        %510 = vmatprep.subr.mxu0 0.0
        %511 = vmatpush1.msra.mxu0 0.0
        %512 = vmatprep.subr.mxu0 0.0
        %513 = vmatpush1.msra.mxu0 0.0
        %514 = vmatprep.subr.mxu0 0.0
        %515 = vmatpush1.msra.mxu0 0.0
        %516 = vmatprep.mubr.f32.mxu0 0.0
        %517 = vmatmul.mubr.f32.gmra.mrb[0].mxu0 %v441
        %v518 = vpop.f32.mrb[0].mxu0
        %v519 = vadd.f32 %v422, %v518
        %v520 = vpop.f32.mrb[0].mxu0
        %521 = vmatprep.mubr.f32.mxu0 0.0
        %522 = vmatmul.mubr.f32.gmra.mrb[0].mxu0 %v444
        %v523 = vpop.f32.mrb[0].mxu0
        %v524 = vadd.f32 %v427, %v523
        %v525 = vpop.f32.mrb[0].mxu0
        %526 = vmatprep.mubr.f32.mxu0 0.0
        %527 = vmatmul.mubr.f32.gmra.mrb[0].mxu0 %v447
        %v528 = vpop.f32.mrb[0].mxu0
        %v529 = vadd.f32 %v432, %v528
        %v530 = vpop.f32.mrb[0].mxu0
        %531 = vmatprep.mubr.f32.mxu0 0.0
        %532 = vmatmul.mubr.f32.gmra.mrb[0].mxu0 %v450
        %v533 = vpop.f32.mrb[0].mxu0
        %v534 = vadd.f32 %v437, %v533
        %v535 = vpop.f32.mrb[0].mxu0
        %536 = vdwg.mxu0
        %v537 = vmax.f32 %v519, 0.0
        %v538 = vmax.f32 %v524, 0.0
        %v539 = vmax.f32 %v529, 0.0
        %v540 = vmax.f32 %v534, 0.0
        %v541 = vld [vmem:[%s4] sm:$0xff]
        %vm542 = vcmask 261120
        %v544 = vsel %vm542, %v541, 0
        %546 = vmatprep.subr.mxu0 0.0
        %547 = vmatpush1.msra.mxu0 %v537
        %548 = vmatprep.subr.mxu0 0.0
        %549 = vmatpush1.msra.mxu0 %v538
        %550 = vmatprep.subr.mxu0 0.0
        %551 = vmatpush1.msra.mxu0 %v539
        %552 = vmatprep.subr.mxu0 0.0
        %553 = vmatpush1.msra.mxu0 %v540
        %554 = vmatprep.subr.mxu0 0.0
        %555 = vmatpush1.msra.mxu0 0.0
        %556 = vmatprep.subr.mxu0 0.0
        %557 = vmatpush1.msra.mxu0 0.0
        %558 = vmatprep.subr.mxu0 0.0
        %559 = vmatpush1.msra.mxu0 0.0
        %560 = vmatprep.subr.mxu0 0.0
        %561 = vmatpush1.msra.mxu0 0.0
        %562 = vmatprep.subr.mxu0 0.0
        %563 = vmatpush1.msra.mxu0 0.0
        %564 = vmatprep.subr.mxu0 0.0
        %565 = vmatpush1.msra.mxu0 0.0
        %566 = vmatprep.subr.mxu0 0.0
        %567 = vmatpush1.msra.mxu0 0.0
        %568 = vmatprep.subr.mxu0 0.0
        %569 = vmatpush1.msra.mxu0 0.0
        %570 = vmatprep.subr.mxu0 0.0
        %571 = vmatpush1.msra.mxu0 0.0
        %572 = vmatprep.subr.mxu0 0.0
        %573 = vmatpush1.msra.mxu0 0.0
        %574 = vmatprep.subr.mxu0 0.0
        %575 = vmatpush1.msra.mxu0 0.0
        %576 = vmatprep.subr.mxu0 0.0
        %577 = vmatpush1.msra.mxu0 0.0
        %578 = vmatprep.subr.mxu0 0.0
        %579 = vmatpush1.msra.mxu0 0.0
        %580 = vmatprep.subr.mxu0 0.0
        %581 = vmatpush1.msra.mxu0 0.0
        %582 = vmatprep.subr.mxu0 0.0
        %583 = vmatpush1.msra.mxu0 0.0
        %584 = vmatprep.subr.mxu0 0.0
        %585 = vmatpush1.msra.mxu0 0.0
        %586 = vmatprep.subr.mxu0 0.0
        %587 = vmatpush1.msra.mxu0 0.0
        %588 = vmatprep.subr.mxu0 0.0
        %589 = vmatpush1.msra.mxu0 0.0
        %590 = vmatprep.subr.mxu0 0.0
        %591 = vmatpush1.msra.mxu0 0.0
        %592 = vmatprep.subr.mxu0 0.0
        %593 = vmatpush1.msra.mxu0 0.0
        %594 = vmatprep.subr.mxu0 0.0
        %595 = vmatpush1.msra.mxu0 0.0
        %596 = vmatprep.subr.mxu0 0.0
        %597 = vmatpush1.msra.mxu0 0.0
        %598 = vmatprep.subr.mxu0 0.0
        %599 = vmatpush1.msra.mxu0 0.0
        %600 = vmatprep.subr.mxu0 0.0
        %601 = vmatpush1.msra.mxu0 0.0
        %602 = vmatprep.subr.mxu0 0.0
        %603 = vmatpush1.msra.mxu0 0.0
        %604 = vmatprep.subr.mxu0 0.0
        %605 = vmatpush1.msra.mxu0 0.0
        %606 = vmatprep.subr.mxu0 0.0
        %607 = vmatpush1.msra.mxu0 0.0
        %608 = vmatprep.subr.mxu0 0.0
        %609 = vmatpush1.msra.mxu0 0.0
        %610 = vmatprep.mubr.f32.mxu0 0.0
        %611 = vmatmul.mubr.f32.gmra.mrb[0].mxu0 %v544
        %v612 = vpop.f32.mrb[0].mxu0
        %v613 = vadd.f32 0.0, %v612
        %v614 = vpop.f32.mrb[0].mxu0
        %615 = vdwg.mxu0
        %v616 = vmul.f32 %v613, %v332
        %v617 = vpack.c.bf16 %v616, %v616
        %v619 = vsel %vm309, %v617, 0
        %621 = vmatprep.subr.bf16.mxu0 0
        %622 = vmatpush1.bf16.msra.mxu0 %v353
        %623 = vmatprep.subr.bf16.mxu0 0
        %624 = vmatpush1.bf16.msra.mxu0 %v354
        %625 = vmatprep.subr.bf16.mxu0 0
        %626 = vmatpush1.bf16.msra.mxu0 %v355
        %627 = vmatprep.subr.bf16.mxu0 0
        %628 = vmatpush1.bf16.msra.mxu0 %v356
        %629 = vmatprep.subr.bf16.mxu0 0
        %630 = vmatpush1.bf16.msra.mxu0 0
        %631 = vmatprep.subr.bf16.mxu0 0
        %632 = vmatpush1.bf16.msra.mxu0 0
        %633 = vmatprep.subr.bf16.mxu0 0
        %634 = vmatpush1.bf16.msra.mxu0 0
        %635 = vmatprep.subr.bf16.mxu0 0
        %636 = vmatpush1.bf16.msra.mxu0 0
        %637 = vmatprep.subr.bf16.mxu0 0
        %638 = vmatpush1.bf16.msra.mxu0 0
        %639 = vmatprep.subr.bf16.mxu0 0
        %640 = vmatpush1.bf16.msra.mxu0 0
        %641 = vmatprep.subr.bf16.mxu0 0
        %642 = vmatpush1.bf16.msra.mxu0 0
        %643 = vmatprep.subr.bf16.mxu0 0
        %644 = vmatpush1.bf16.msra.mxu0 0
        %645 = vmatprep.subr.bf16.mxu0 0
        %646 = vmatpush1.bf16.msra.mxu0 0
        %647 = vmatprep.subr.bf16.mxu0 0
        %648 = vmatpush1.bf16.msra.mxu0 0
        %649 = vmatprep.subr.bf16.mxu0 0
        %650 = vmatpush1.bf16.msra.mxu0 0
        %651 = vmatprep.subr.bf16.mxu0 0
        %652 = vmatpush1.bf16.msra.mxu0 0
        %653 = vmatprep.mubr.bf16.mxu0 0
        %654 = vmatmul.mubr.bf16.gmra.mrb[0].mxu0 %v619
        %v655 = vpop.f32.mrb[0].mxu0
        %v656 = vadd.f32 0.0, %v655
        %v657 = vpop.f32.mrb[0].mxu0
        %v658 = vpop.f32.mrb[0].mxu0
        %v659 = vpop.f32.mrb[0].mxu0
        %660 = vdwg.mxu0
        %v661 = vmul.f32 %v656, %v332
        %v662 = vmul.f32 %v613, %v333
        %v663 = vadd.f32 %v661, %v662
        %v664 = vld [vmem:[%s5] sm:$0xff]
        %666 = vset.pattern.permute.xlu0 0
        %667 = vperm.xlu0 %666, %v664
        %v668 = vpop.permute.xlu0 %667
        %v670 = vadd.f32 %v663, %v668
        %671 = vst.msk [vmem:[%s284] sm:$0xff] %vm309, %v670
        %s672 = sand.u32 %s167, 1
        %s673 = scalar_lea.sflag [#allocation4], %s672
        %s674 = sand.u32 %s167, 1
        %s675 = smul.addr %s674, 8
        %s676 = scalar_lea.vmem [#allocation5], %s675
        // Predicated region
        $region49: #{tpu_custom_call.1} parent=43 // pred_check
          %p677 = pneg %p177
        $region50: #{tpu_custom_call.1} parent=43 // pred_check_branch
          %679 = sbr.rel (%p677) target = $region52
        $region51: #{tpu_custom_call.1} parent=43 // pred_region
          %s681 = ssub.s32 128, 128
          %682 = vsyncadd %s673, %s681
          %s683 = smul.addr %s23, 128
          %s684 = scalar_lea.hbm %s6, %s683
          %s686 = sshll.u32 %s676, 4
          %s687 = int_to_ptr.vmem [resolvable:$true] %s686
          %689 = dma.vmem_to_hbm [thread:$0]  %s687, 128, %s684, %s673
        $region52: #{tpu_custom_call.1} parent=43 // pred_fallthru
          _
      $region44: #{tpu_custom_call.1} parent=5 // pred_fallthru
        _
      %p690 = scmp.le.s32.totalorder 2, %s18
      // Predicated region
      $region53: #{tpu_custom_call.1} parent=5 // pred_check
        %p691 = pneg %p690
      $region54: #{tpu_custom_call.1} parent=5 // pred_check_branch
        %693 = sbr.rel (%p691) target = $region56
      $region55: #{tpu_custom_call.1} parent=5 // pred_region
        %s694 = ssub.s32 %s18, 2
        // Predicated region
        $region57: #{tpu_custom_call.1} parent=55 // pred_check
          %p695 = pneg %p183
        $region58: #{tpu_custom_call.1} parent=55 // pred_check_branch
          %697 = sbr.rel (%p695) target = $region60
        $region59: #{tpu_custom_call.1} parent=55 // pred_region
          %s698 = sand.u32 %s168, 1
          %s699 = scalar_lea.sflag [#allocation4], %s698
          %s700 = sand.u32 %s168, 1
          %s701 = smul.addr %s700, 8
          %s702 = scalar_lea.vmem [#allocation5], %s701
          %703 = dma.done %s699, 128
        $region60: #{tpu_custom_call.1} parent=55 // pred_fallthru
          _
      $region56: #{tpu_custom_call.1} parent=5 // pred_fallthru
        _
    $region6: #{tpu_custom_call.1} parent=1 // loop_footer
      %s22 = sadd.s32 1, %s18
    $region7: #{tpu_custom_call.1} parent=1 // loop_footer_branch
      %17 = sbr.rel target = $region3
    $region8: #{tpu_custom_call.1} parent=1 // loop_exit
      _
    %704 = vsyncpa [#allocation3], 1
    %s705 = scalar_lea.sflag [#allocation3], 1
    %706 = vsyncpa %s705, 1
    %707 = vsyncpa [#allocation4], 1
    %s708 = scalar_lea.sflag [#allocation4], 1
    %709 = vsyncpa %s708, 1

</llo_original>
